<compile_context>
chip_gen: v5e
topology: v5e:2x2
jax: 0.10.0
libtpu: 0.0.40
codegen_flags: <defaults>
</compile_context>

<pallas_src>
from functools import lru_cache

import numpy as np
import jax
import jax.numpy as jnp
from jax.experimental import pallas as pl
from jax.experimental.pallas import tpu as pltpu


def _dct_matrix(n: int) -> np.ndarray:
    """Equivalent of scipy.fft.dct(np.eye(n), norm='ortho').

    M[m, k] = s_k * cos(pi * (2m + 1) * k / (2n)),
    s_0 = sqrt(1/n), s_k = sqrt(2/n) for k > 0.  dct(v) = v @ M.
    """
    m = np.arange(n)[:, None].astype(np.float64)
    k = np.arange(n)[None, :].astype(np.float64)
    mat = np.cos(np.pi * (2.0 * m + 1.0) * k / (2.0 * n))
    scale = np.full((1, n), np.sqrt(2.0 / n))
    scale[0, 0] = np.sqrt(1.0 / n)
    return (mat * scale).astype(np.float32)


def _round_up(v: int, m: int) -> int:
    return (v + m - 1) // m * m


@lru_cache(maxsize=None)
def _dct_bases(ws: int, wt: int, spc: int, dtype_name: str):
    """Block-diagonal DCT bases for the lane (w) and sublane (h) stages."""
    m1 = _dct_matrix(ws)
    bw = np.kron(np.eye(wt // ws, dtype=np.float32), m1)      # (wt, wt)
    bh = np.kron(np.eye(spc, dtype=np.float32), m1.T)          # (spc*ws, spc*ws)
    dt = jnp.dtype(dtype_name)
    return jnp.asarray(bw, dt), jnp.asarray(bh, dt)


def _make_wdct_kernel(r: int, ws: int, wt: int, spc: int):
    """Build the kernel for one (r, ws, wt) block of row-slabs."""
    chunk_sizes = [spc] * (r // spc)
    if r % spc:
        chunk_sizes.append(r % spc)

    def kernel(x_ref, bw_ref, bh_ref, o_ref):
        # x_ref / o_ref: (r, ws, wt); bw_ref: (wt, wt); bh_ref: (spc*ws, spc*ws)
        bw = bw_ref[...]
        bh = bh_ref[...]
        s0 = 0
        for gs in chunk_sizes:          # static, fully unrolled
            rows = gs * ws
            # (gs, ws, wt) -> (rows, wt): free leading-dim merge, lanes untouched.
            xa = x_ref[s0:s0 + gs].reshape(rows, wt)
            # step A: w-axis DCT, lane-dense K=wt contraction on the MXU.
            t = jnp.dot(xa, bw, preferred_element_type=jnp.float32)
            t = t.astype(bw.dtype)      # keep both MXU operands in one dtype
            # step B: h-axis DCT; block-diagonal left multiply, K = rows <= 128.
            bh_c = bh if rows == bh.shape[0] else bh[:rows, :rows]
            y = jnp.dot(bh_c, t, preferred_element_type=jnp.float32)
            o_ref[s0:s0 + gs] = y.reshape(gs, ws, wt).astype(o_ref.dtype)
            s0 += gs

    return kernel


def window_dct(x: jax.Array, window_size: int = 8) -> jax.Array:
    """Pallas TPU implementation of WindowDCT.forward (NCHW in / NCHW out)."""
    B, C, H, W = x.shape
    ws = window_size
    assert H % ws == 0 and W % ws == 0, "spatial dims must be divisible by window_size"
    GH, GW = H // ws, W // ws

    out_dtype = x.dtype
    if x.dtype in (jnp.float32, jnp.bfloat16):
        compute_dtype = x.dtype
    else:
        compute_dtype = jnp.float32            # avoid mixed-dtype MXU ops
        x = x.astype(compute_dtype)
    itemsize = jnp.dtype(compute_dtype).itemsize

    # Zero-copy "row slab" view: one slab = ws image rows = GW windows.
    n_slabs = B * C * GH
    xv = x.reshape(n_slabs, ws, W)

    # ---- lane (width) tiling -------------------------------------------------
    # WT = 128 keeps every load/store lane-dense and the w-DCT at the
    # FLOP-minimal K=128.  Widths that are not a multiple of 128 only mask the
    # tail lane tile; the valid width there is still a multiple of ws, so the
    # block-diagonal basis never mixes windows across the mask.
    if W > 128 and 128 % ws == 0:
        wt = 128
    else:
        wt = W
    lane_grid = pl.cdiv(W, wt)

    # ---- slab (row) tiling ---------------------------------------------------
    spc = max(1, 128 // ws) if 128 % ws == 0 else 1   # slabs per 128-row chunk
    slab_bytes = ws * wt * itemsize
    # ~2 MiB activation blocks (in + out, double-buffered ~= 8 MiB of VMEM).
    r_cap = max(spc, ((2 << 20) // max(slab_bytes, 1)) // spc * spc)
    if n_slabs > r_cap:
        r = r_cap                                        # many ~2 MiB blocks
    elif lane_grid == 1 and n_slabs * slab_bytes >= (1 << 20):
        # Enough work for both v7x TensorCores: >=2 steps of >= ~0.5 MiB each.
        r = _round_up(pl.cdiv(n_slabs, 2), spc)
    else:
        r = max(1, n_slabs)                              # single block, no forced split
    slab_grid = pl.cdiv(n_slabs, r)
    # NOTE: a possibly-partial tail block is cheaper than zero-padding the
    # input (padding would cost a full extra HBM round trip).

    bw, bh = _dct_bases(ws, wt, spc, jnp.dtype(compute_dtype).name)
    kernel = _make_wdct_kernel(r, ws, wt, spc)

    y = pl.pallas_call(
        kernel,
        out_shape=jax.ShapeDtypeStruct((n_slabs, ws, W), out_dtype),
        grid_spec=pltpu.PrefetchScalarGridSpec(
            num_scalar_prefetch=0,
            grid=(slab_grid, lane_grid),
            in_specs=[
                pl.BlockSpec((r, ws, wt), lambda i, j: (i, 0, j)),          # activations
                pl.BlockSpec((wt, wt), lambda i, j: (0, 0)),                # w-DCT basis
                pl.BlockSpec((spc * ws, spc * ws), lambda i, j: (0, 0)),    # h-DCT basis
            ],
            out_specs=pl.BlockSpec((r, ws, wt), lambda i, j: (i, 0, j)),
        ),
        compiler_params=pltpu.CompilerParams(
            dimension_semantics=("parallel", "parallel"),
            vmem_limit_bytes=32 * 1024 * 1024,
        ),
    )(xv, bw, bh)

    # Layout plumbing back to (B, C*ws*ws, H//ws, W//ws): one XLA transpose.
    # TODO(synk): fusing this permute into the out_spec would require
    # sub-128-lane scattered stores (last dims GH, GW); left to XLA.
    y = y.reshape(B, C, GH, ws, GW, ws).transpose(0, 1, 3, 5, 2, 4)
    return y.reshape(B, C * ws * ws, GH, GW)


if __name__ == "__main__":
    B, C, H, W = 2, 4, 16, 16
    window_size = 8
    key = jax.random.PRNGKey(0)
    x = jax.random.normal(key, (B, C, H, W), dtype=jnp.float32)

    out = jax.block_until_ready(window_dct(x, window_size=window_size))

    # Host (float64) reference of WindowDCT.forward semantics.
    ws = window_size
    GH, GW = H // ws, W // ws
    xn = np.asarray(x, dtype=np.float64)
    m1 = _dct_matrix(ws).astype(np.float64)
    xw = xn.reshape(B, C, GH, ws, GW, ws).transpose(0, 1, 2, 4, 3, 5)  # (B,C,GH,GW,h,w)
    d = np.einsum('...hw,hi,wj->...ij', xw, m1, m1)                    # (B,C,GH,GW,i,j)
    ref = d.transpose(0, 1, 4, 5, 2, 3).reshape(B, C * ws * ws, GH, GW)

    assert out.shape == (B, C * ws * ws, GH, GW)
    np.testing.assert_allclose(np.asarray(out), ref, rtol=1e-5, atol=1e-5)

    print("KERNEL_OK")
</pallas_src>

<mosaic_0001>
module attributes {stable_mosaic.version = 11 : i64} {
  func.func @kernel(%arg0: i32, %arg1: i32, %arg2: memref<16x8x16xf32, #tpu.memory_space<vmem>>, %arg3: memref<16x16xf32, #tpu.memory_space<vmem>>, %arg4: memref<128x128xf32, #tpu.memory_space<vmem>>, %arg5: memref<16x8x16xf32, #tpu.memory_space<vmem>>) attributes {dimension_semantics = [#tpu.dimension_semantics<parallel>, #tpu.dimension_semantics<parallel>], iteration_bounds = array<i64: 1, 1>, scalar_prefetch = 0 : i64, scratch_operands = 0 : i64, tpu.core_type = #tpu.core_type<tc>, window_params = [{transform_indices = @transform_0, window_bounds = array<i64: 16, 8, 16>}, {pipeline_mode = #tpu.pipeline_mode<synchronous>, transform_indices = @transform_1, window_bounds = array<i64: 16, 16>}, {pipeline_mode = #tpu.pipeline_mode<synchronous>, transform_indices = @transform_2, window_bounds = array<i64: 128, 128>}, {transform_indices = @transform_3, window_bounds = array<i64: 16, 8, 16>}]} {
    %c0 = arith.constant 0 : index
    %c0_0 = arith.constant 0 : index
    %0 = vector.load %arg3[%c0, %c0_0] : memref<16x16xf32, #tpu.memory_space<vmem>>, vector<16x16xf32>
    %c0_1 = arith.constant 0 : index
    %c0_2 = arith.constant 0 : index
    %1 = vector.load %arg4[%c0_1, %c0_2] : memref<128x128xf32, #tpu.memory_space<vmem>>, vector<128x128xf32>
    %c0_3 = arith.constant 0 : index
    %c0_4 = arith.constant 0 : index
    %c0_5 = arith.constant 0 : index
    %2 = vector.load %arg2[%c0_3, %c0_4, %c0_5] : memref<16x8x16xf32, #tpu.memory_space<vmem>>, vector<16x8x16xf32>
    %3 = vector.shape_cast %2 : vector<16x8x16xf32> to vector<128x16xf32>
    %cst = arith.constant dense<0.000000e+00> : vector<128x16xf32>
    %4 = tpu.matmul %3, %0, %cst {dimension_numbers = #tpu.dot_dimension_numbers<[1], [0], [0], [1], [0, 0, 1, 1], [], []>} : vector<128x16xf32>, vector<16x16xf32>, vector<128x16xf32> -> vector<128x16xf32>
    %cst_6 = arith.constant dense<0.000000e+00> : vector<128x16xf32>
    %5 = tpu.matmul %1, %4, %cst_6 {dimension_numbers = #tpu.dot_dimension_numbers<[1], [0], [0], [1], [0, 0, 1, 1], [], []>} : vector<128x128xf32>, vector<128x16xf32>, vector<128x16xf32> -> vector<128x16xf32>
    %6 = vector.shape_cast %5 : vector<128x16xf32> to vector<16x8x16xf32>
    %c0_7 = arith.constant 0 : index
    %c0_8 = arith.constant 0 : index
    %c0_9 = arith.constant 0 : index
    %7 = vector.load %arg5[%c0_7, %c0_8, %c0_9] : memref<16x8x16xf32, #tpu.memory_space<vmem>>, vector<16x8x16xf32>
    tpu.vector_store %arg5[%c0_7, %c0_8, %c0_9], %6 {strides = array<i32>} : memref<16x8x16xf32, #tpu.memory_space<vmem>>, vector<16x8x16xf32>,
    return
  }
  func.func @transform_0(%arg0: i32, %arg1: i32) -> (i32, i32, i32) {
    %c0_i32 = arith.constant 0 : i32
    %c0_i32_0 = arith.constant 0 : i32
    return %arg0, %c0_i32, %arg1 : i32, i32, i32
  }
  func.func @transform_1(%arg0: i32, %arg1: i32) -> (i32, i32) {
    %c0_i32 = arith.constant 0 : i32
    %c0_i32_0 = arith.constant 0 : i32
    %c0_i32_1 = arith.constant 0 : i32
    return %c0_i32, %c0_i32_0 : i32, i32
  }
  func.func @transform_2(%arg0: i32, %arg1: i32) -> (i32, i32) {
    %c0_i32 = arith.constant 0 : i32
    %c0_i32_0 = arith.constant 0 : i32
    %c0_i32_1 = arith.constant 0 : i32
    return %c0_i32, %c0_i32_0 : i32, i32
  }
  func.func @transform_3(%arg0: i32, %arg1: i32) -> (i32, i32, i32) {
    %c0_i32 = arith.constant 0 : i32
    %c0_i32_0 = arith.constant 0 : i32
    return %arg0, %c0_i32, %arg1 : i32, i32, i32
  }
}

</mosaic_0001>

<llo_original>
// kernel: tpu_custom_call.1
$region0: #{tpu_custom_call.1}
  #allocation0 [shape = 'u32[]', space=smem, size = 0x4, offset = 0x4, fixed_abs, tag = 'smem constant byte address 0x4 - core index']
  #allocation1 [shape = 'u32[72,128]{1,0:T(1,128)}', space=vmem, size = 0x9000, scoped, tag = 'internal scratch']
  %s0 = inlined_call_operand.hbm [shape: f32[16,8,16], index: 0, kind: input, shape index: {}]
  %s1 = inlined_call_operand.hbm [shape: f32[16,16], index: 1, kind: input, shape index: {}]
  %s2 = inlined_call_operand.hbm [shape: f32[128,128], index: 2, kind: input, shape index: {}]
  %s3 = inlined_call_operand.hbm [shape: f32[16,8,16], index: 3, kind: output, shape index: {}]
  %s4 = sld [smem:[#allocation0]]
  $region34: #{tpu_custom_call.1} parent=0
    _
  %s6 = ssub.s32 1, %s4
  %s7 = scalar_select 0, %s6, %s4
  $region1: #{tpu_custom_call.1} parent=0
    #allocation2 [shape = 'u8[65536]{0}', space=vmem, size = 0x10000, scoped, tag = 'input window, operand 0, single buffered']
    #allocation3 [shape = 's32[1]{0}', space=sflag, size = 0x4, scoped, tag = 'scoped memory for tpu_custom_call.1']
    #allocation4 [shape = 's32[1]{0}', space=sflag, size = 0x4, scoped, tag = 'scoped memory for tpu_custom_call.1']
    #allocation5 [shape = 'u8[8192]{0}', space=vmem, size = 0x2000, scoped, tag = 'input window, operand 1, single buffered']
    #allocation6 [shape = 's32[1]{0}', space=sflag, size = 0x4, scoped, tag = 'scoped memory for tpu_custom_call.1']
    #allocation7 [shape = 'u8[65536]{0}', space=vmem, size = 0x10000, scoped, tag = 'input window, operand 2, single buffered']
    #allocation8 [shape = 'u8[65536]{0}', space=vmem, size = 0x10000, scoped, tag = 'output window, operand 0, single buffered']
    %8 = vsyncpa [#allocation3], 0
    %9 = vsyncpa [#allocation6], 0
    %10 = vsyncpa [#allocation4], 0
    // Predicated region
    $region2: #{tpu_custom_call.1} parent=1 // pred_check
      _
    $region3: #{tpu_custom_call.1} parent=1 // pred_check_branch
      %12 = sbr.rel (0) target = $region5
    $region4: #{tpu_custom_call.1} parent=1 // pred_region
      %14 = vsyncadd [#allocation3], 0
      %s15 = sshll.u32 %s0, 4
      %s16 = int_to_ptr.hbm [resolvable:$true] %s15
      %s17 = sshll.u32 [#allocation2], 4
      %s18 = int_to_ptr.vmem [resolvable:$true] %s17
      %23 = dma.hbm_to_vmem [thread:$0]  %s16, 2048, %s18, [#allocation3], 128, 128, 8
    $region5: #{tpu_custom_call.1} parent=1 // pred_fallthru
      _
    // Predicated region
    $region6: #{tpu_custom_call.1} parent=1 // pred_check
      _
    $region7: #{tpu_custom_call.1} parent=1 // pred_check_branch
      %25 = sbr.rel (0) target = $region9
    $region8: #{tpu_custom_call.1} parent=1 // pred_region
      %27 = vsyncadd [#allocation6], 0
      %s28 = sshll.u32 %s1, 4
      %s29 = int_to_ptr.hbm [resolvable:$true] %s28
      %s30 = sshll.u32 [#allocation5], 4
      %s31 = int_to_ptr.vmem [resolvable:$true] %s30
      %36 = dma.hbm_to_vmem [thread:$0]  %s29, 256, %s31, [#allocation6], 128, 128, 8
    $region9: #{tpu_custom_call.1} parent=1 // pred_fallthru
      _
    // Predicated region
    $region10: #{tpu_custom_call.1} parent=1 // pred_check
      _
    $region11: #{tpu_custom_call.1} parent=1 // pred_check_branch
      %38 = sbr.rel (0) target = $region13
    $region12: #{tpu_custom_call.1} parent=1 // pred_region
      %40 = vsyncadd [#allocation6], 0
      %s41 = sshll.u32 %s2, 4
      %s42 = int_to_ptr.hbm [resolvable:$true] %s41
      %s43 = sshll.u32 [#allocation7], 4
      %s44 = int_to_ptr.vmem [resolvable:$true] %s43
      %49 = dma.hbm_to_vmem [thread:$0]  %s42, 2048, %s44, [#allocation6], 128, 128, 8
    $region13: #{tpu_custom_call.1} parent=1 // pred_fallthru
      _
    // Predicated region
    $region14: #{tpu_custom_call.1} parent=1 // pred_check
      _
    $region15: #{tpu_custom_call.1} parent=1 // pred_check_branch
      %51 = sbr.rel (0) target = $region17
    $region16: #{tpu_custom_call.1} parent=1 // pred_region
      %53 = dma.done [#allocation3], 2048
    $region17: #{tpu_custom_call.1} parent=1 // pred_fallthru
      _
    // Predicated region
    $region18: #{tpu_custom_call.1} parent=1 // pred_check
      _
    $region19: #{tpu_custom_call.1} parent=1 // pred_check_branch
      %55 = sbr.rel (0) target = $region21
    $region20: #{tpu_custom_call.1} parent=1 // pred_region
      %57 = dma.done [#allocation6], 256
    $region21: #{tpu_custom_call.1} parent=1 // pred_fallthru
      _
    // Predicated region
    $region22: #{tpu_custom_call.1} parent=1 // pred_check
      _
    $region23: #{tpu_custom_call.1} parent=1 // pred_check_branch
      %59 = sbr.rel (0) target = $region25
    $region24: #{tpu_custom_call.1} parent=1 // pred_region
      %61 = dma.done [#allocation6], 2048
    $region25: #{tpu_custom_call.1} parent=1 // pred_fallthru
      _
    %v62 = vld [vmem:[#allocation5] sm:$0xff]
    %v63 = vld [vmem:[#allocation5 + $0x8] sm:$0xff]
    %v64 = vld [vmem:[#allocation7] sm:$0xff]
    %v65 = vld [vmem:[#allocation7 + $0x8] sm:$0xff]
    %v66 = vld [vmem:[#allocation7 + $0x10] sm:$0xff]
    %v67 = vld [vmem:[#allocation7 + $0x18] sm:$0xff]
    %v68 = vld [vmem:[#allocation7 + $0x20] sm:$0xff]
    %v69 = vld [vmem:[#allocation7 + $0x28] sm:$0xff]
    %v70 = vld [vmem:[#allocation7 + $0x30] sm:$0xff]
    %v71 = vld [vmem:[#allocation7 + $0x38] sm:$0xff]
    %v72 = vld [vmem:[#allocation7 + $0x40] sm:$0xff]
    %v73 = vld [vmem:[#allocation7 + $0x48] sm:$0xff]
    %v74 = vld [vmem:[#allocation7 + $0x50] sm:$0xff]
    %v75 = vld [vmem:[#allocation7 + $0x58] sm:$0xff]
    %v76 = vld [vmem:[#allocation7 + $0x60] sm:$0xff]
    %v77 = vld [vmem:[#allocation7 + $0x68] sm:$0xff]
    %v78 = vld [vmem:[#allocation7 + $0x70] sm:$0xff]
    %v79 = vld [vmem:[#allocation7 + $0x78] sm:$0xff]
    %v80 = vld [vmem:[#allocation2] sm:$0xff]
    %v81 = vld [vmem:[#allocation2 + $0x8] sm:$0xff]
    %v82 = vld [vmem:[#allocation2 + $0x10] sm:$0xff]
    %v83 = vld [vmem:[#allocation2 + $0x18] sm:$0xff]
    %v84 = vld [vmem:[#allocation2 + $0x20] sm:$0xff]
    %v85 = vld [vmem:[#allocation2 + $0x28] sm:$0xff]
    %v86 = vld [vmem:[#allocation2 + $0x30] sm:$0xff]
    %v87 = vld [vmem:[#allocation2 + $0x38] sm:$0xff]
    %v88 = vld [vmem:[#allocation2 + $0x40] sm:$0xff]
    %v89 = vld [vmem:[#allocation2 + $0x48] sm:$0xff]
    %v90 = vld [vmem:[#allocation2 + $0x50] sm:$0xff]
    %v91 = vld [vmem:[#allocation2 + $0x58] sm:$0xff]
    %v92 = vld [vmem:[#allocation2 + $0x60] sm:$0xff]
    %v93 = vld [vmem:[#allocation2 + $0x68] sm:$0xff]
    %v94 = vld [vmem:[#allocation2 + $0x70] sm:$0xff]
    %v95 = vld [vmem:[#allocation2 + $0x78] sm:$0xff]
    %vm96 = vcmask 130048
    %v98 = vsel %vm96, %v80, 0
    %v101 = vsel %vm96, %v81, 0
    %v104 = vsel %vm96, %v82, 0
    %v107 = vsel %vm96, %v83, 0
    %v110 = vsel %vm96, %v84, 0
    %v113 = vsel %vm96, %v85, 0
    %v116 = vsel %vm96, %v86, 0
    %v119 = vsel %vm96, %v87, 0
    %v122 = vsel %vm96, %v88, 0
    %v125 = vsel %vm96, %v89, 0
    %v128 = vsel %vm96, %v90, 0
    %v131 = vsel %vm96, %v91, 0
    %v134 = vsel %vm96, %v92, 0
    %v137 = vsel %vm96, %v93, 0
    %v140 = vsel %vm96, %v94, 0
    %v143 = vsel %vm96, %v95, 0
    %145 = vmatpush.msra.mxu0 0.0
    %146 = vmatpush.msra.mxu0 0.0
    %147 = vmatpush.msra.mxu0 0.0
    %148 = vmatpush.msra.mxu0 0.0
    %149 = vmatpush.msra.mxu0 0.0
    %150 = vmatpush.msra.mxu0 0.0
    %151 = vmatpush.msra.mxu0 0.0
    %152 = vmatpush.msra.mxu0 0.0
    %153 = vmatpush.msra.mxu0 0.0
    %154 = vmatpush.msra.mxu0 0.0
    %155 = vmatpush.msra.mxu0 0.0
    %156 = vmatpush.msra.mxu0 0.0
    %157 = vmatpush.msra.mxu0 0.0
    %158 = vmatpush.msra.mxu0 0.0
    %159 = vmatpush.msra.mxu0 %v63
    %160 = vmatpush.msra.mxu0 %v62
    %161 = vmatmul.f32.gmra.mxu0 %v98
    %v162 = vpop.f32.mrf.mxu0
    %v163 = vadd.f32 0.0, %v162
    %164 = vmatmul.f32.gmra.mxu0 %v101
    %v165 = vpop.f32.mrf.mxu0
    %v166 = vadd.f32 0.0, %v165
    %167 = vmatmul.f32.gmra.mxu0 %v104
    %v168 = vpop.f32.mrf.mxu0
    %v169 = vadd.f32 0.0, %v168
    %170 = vmatmul.f32.gmra.mxu0 %v107
    %v171 = vpop.f32.mrf.mxu0
    %v172 = vadd.f32 0.0, %v171
    %173 = vmatmul.f32.gmra.mxu0 %v110
    %v174 = vpop.f32.mrf.mxu0
    %v175 = vadd.f32 0.0, %v174
    %176 = vmatmul.f32.gmra.mxu0 %v113
    %v177 = vpop.f32.mrf.mxu0
    %v178 = vadd.f32 0.0, %v177
    %179 = vmatmul.f32.gmra.mxu0 %v116
    %v180 = vpop.f32.mrf.mxu0
    %v181 = vadd.f32 0.0, %v180
    %182 = vmatmul.f32.gmra.mxu0 %v119
    %v183 = vpop.f32.mrf.mxu0
    %v184 = vadd.f32 0.0, %v183
    %185 = vmatmul.f32.gmra.mxu0 %v122
    %v186 = vpop.f32.mrf.mxu0
    %v187 = vadd.f32 0.0, %v186
    %188 = vmatmul.f32.gmra.mxu0 %v125
    %v189 = vpop.f32.mrf.mxu0
    %v190 = vadd.f32 0.0, %v189
    %191 = vmatmul.f32.gmra.mxu0 %v128
    %v192 = vpop.f32.mrf.mxu0
    %v193 = vadd.f32 0.0, %v192
    %194 = vmatmul.f32.gmra.mxu0 %v131
    %v195 = vpop.f32.mrf.mxu0
    %v196 = vadd.f32 0.0, %v195
    %197 = vmatmul.f32.gmra.mxu0 %v134
    %v198 = vpop.f32.mrf.mxu0
    %v199 = vadd.f32 0.0, %v198
    %200 = vmatmul.f32.gmra.mxu0 %v137
    %v201 = vpop.f32.mrf.mxu0
    %v202 = vadd.f32 0.0, %v201
    %203 = vmatmul.f32.gmra.mxu0 %v140
    %v204 = vpop.f32.mrf.mxu0
    %v205 = vadd.f32 0.0, %v204
    %206 = vmatmul.f32.gmra.mxu0 %v143
    %v207 = vpop.f32.mrf.mxu0
    %v208 = vadd.f32 0.0, %v207
    %209 = vdwg.mxu0
    %210 = vmatpush.msra.mxu0 %v208
    %211 = vmatpush.msra.mxu0 %v205
    %212 = vmatpush.msra.mxu0 %v202
    %213 = vmatpush.msra.mxu0 %v199
    %214 = vmatpush.msra.mxu0 %v196
    %215 = vmatpush.msra.mxu0 %v193
    %216 = vmatpush.msra.mxu0 %v190
    %217 = vmatpush.msra.mxu0 %v187
    %218 = vmatpush.msra.mxu0 %v184
    %219 = vmatpush.msra.mxu0 %v181
    %220 = vmatpush.msra.mxu0 %v178
    %221 = vmatpush.msra.mxu0 %v175
    %222 = vmatpush.msra.mxu0 %v172
    %223 = vmatpush.msra.mxu0 %v169
    %224 = vmatpush.msra.mxu0 %v166
    %225 = vmatpush.msra.mxu0 %v163
    %226 = vmatmul.f32.gmra.mxu0 %v64
    %v227 = vpop.f32.mrf.mxu0
    %v228 = vadd.f32 0.0, %v227
    %229 = vmatmul.f32.gmra.mxu0 %v65
    %v230 = vpop.f32.mrf.mxu0
    %v231 = vadd.f32 0.0, %v230
    %232 = vmatmul.f32.gmra.mxu0 %v66
    %v233 = vpop.f32.mrf.mxu0
    %v234 = vadd.f32 0.0, %v233
    %235 = vmatmul.f32.gmra.mxu0 %v67
    %v236 = vpop.f32.mrf.mxu0
    %v237 = vadd.f32 0.0, %v236
    %238 = vmatmul.f32.gmra.mxu0 %v68
    %v239 = vpop.f32.mrf.mxu0
    %v240 = vadd.f32 0.0, %v239
    %241 = vmatmul.f32.gmra.mxu0 %v69
    %v242 = vpop.f32.mrf.mxu0
    %v243 = vadd.f32 0.0, %v242
    %244 = vmatmul.f32.gmra.mxu0 %v70
    %v245 = vpop.f32.mrf.mxu0
    %v246 = vadd.f32 0.0, %v245
    %247 = vmatmul.f32.gmra.mxu0 %v71
    %v248 = vpop.f32.mrf.mxu0
    %v249 = vadd.f32 0.0, %v248
    %250 = vmatmul.f32.gmra.mxu0 %v72
    %v251 = vpop.f32.mrf.mxu0
    %v252 = vadd.f32 0.0, %v251
    %253 = vmatmul.f32.gmra.mxu0 %v73
    %v254 = vpop.f32.mrf.mxu0
    %v255 = vadd.f32 0.0, %v254
    %256 = vmatmul.f32.gmra.mxu0 %v74
    %v257 = vpop.f32.mrf.mxu0
    %v258 = vadd.f32 0.0, %v257
    %259 = vmatmul.f32.gmra.mxu0 %v75
    %v260 = vpop.f32.mrf.mxu0
    %v261 = vadd.f32 0.0, %v260
    %262 = vmatmul.f32.gmra.mxu0 %v76
    %v263 = vpop.f32.mrf.mxu0
    %v264 = vadd.f32 0.0, %v263
    %265 = vmatmul.f32.gmra.mxu0 %v77
    %v266 = vpop.f32.mrf.mxu0
    %v267 = vadd.f32 0.0, %v266
    %268 = vmatmul.f32.gmra.mxu0 %v78
    %v269 = vpop.f32.mrf.mxu0
    %v270 = vadd.f32 0.0, %v269
    %271 = vmatmul.f32.gmra.mxu0 %v79
    %v272 = vpop.f32.mrf.mxu0
    %v273 = vadd.f32 0.0, %v272
    %274 = vdwg.mxu0
    %275 = vst.msk [vmem:[#allocation8] sm:$0xff] %vm96, %v228
    %276 = vst.msk [vmem:[#allocation8 + $0x8] sm:$0xff] %vm96, %v231
    %277 = vst.msk [vmem:[#allocation8 + $0x10] sm:$0xff] %vm96, %v234
    %278 = vst.msk [vmem:[#allocation8 + $0x18] sm:$0xff] %vm96, %v237
    %279 = vst.msk [vmem:[#allocation8 + $0x20] sm:$0xff] %vm96, %v240
    %280 = vst.msk [vmem:[#allocation8 + $0x28] sm:$0xff] %vm96, %v243
    %281 = vst.msk [vmem:[#allocation8 + $0x30] sm:$0xff] %vm96, %v246
    %282 = vst.msk [vmem:[#allocation8 + $0x38] sm:$0xff] %vm96, %v249
    %283 = vst.msk [vmem:[#allocation8 + $0x40] sm:$0xff] %vm96, %v252
    %284 = vst.msk [vmem:[#allocation8 + $0x48] sm:$0xff] %vm96, %v255
    %285 = vst.msk [vmem:[#allocation8 + $0x50] sm:$0xff] %vm96, %v258
    %286 = vst.msk [vmem:[#allocation8 + $0x58] sm:$0xff] %vm96, %v261
    %287 = vst.msk [vmem:[#allocation8 + $0x60] sm:$0xff] %vm96, %v264
    %288 = vst.msk [vmem:[#allocation8 + $0x68] sm:$0xff] %vm96, %v267
    %289 = vst.msk [vmem:[#allocation8 + $0x70] sm:$0xff] %vm96, %v270
    %290 = vst.msk [vmem:[#allocation8 + $0x78] sm:$0xff] %vm96, %v273
    // Predicated region
    $region26: #{tpu_custom_call.1} parent=1 // pred_check
      _
    $region27: #{tpu_custom_call.1} parent=1 // pred_check_branch
      %292 = sbr.rel (0) target = $region29
    $region28: #{tpu_custom_call.1} parent=1 // pred_region
      %294 = vsyncadd [#allocation4], 0
      %s295 = sshll.u32 [#allocation8], 4
      %s296 = int_to_ptr.vmem [resolvable:$true] %s295
      %s297 = sshll.u32 %s3, 4
      %s298 = int_to_ptr.hbm [resolvable:$true] %s297
      %303 = dma.vmem_to_hbm [thread:$0]  %s296, 2048, %s298, [#allocation4], 128, 128, 8
    $region29: #{tpu_custom_call.1} parent=1 // pred_fallthru
      _
    // Predicated region
    $region30: #{tpu_custom_call.1} parent=1 // pred_check
      _
    $region31: #{tpu_custom_call.1} parent=1 // pred_check_branch
      %305 = sbr.rel (0) target = $region33
    $region32: #{tpu_custom_call.1} parent=1 // pred_region
      %307 = dma.done [#allocation4], 2048
    $region33: #{tpu_custom_call.1} parent=1 // pred_fallthru
      _
    %308 = vsyncpa [#allocation3], 1
    %309 = vsyncpa [#allocation6], 1
    %310 = vsyncpa [#allocation4], 1

</llo_original>
